<compile_context>
chip_gen: v6e
topology: v6e:2x2x1
jax: 0.10.0
libtpu: 0.0.40
codegen_flags: <defaults>
</compile_context>

<pallas_src>
import jax
import jax.numpy as jnp
from jax.experimental import pallas as pl
from jax.experimental.pallas import tpu as pltpu


def _round_up(x, m):
    return (x + m - 1) // m * m


def _down4_kernel(x_ref, w_ref, b_ref, o_ref):
    # x: (TM, Kp) compute dtype, w: (Kp, Cp) compute dtype, b: (1, Cp) f32.
    acc = jnp.dot(x_ref[...], w_ref[...], preferred_element_type=jnp.float32)
    # bias add + complex_relu (ReLU on real / imag independently), f32 epilogue.
    o_ref[...] = jnp.maximum(acc + b_ref[...], 0.0)


def _im2col_s2_k3_p1(x_nhwc):
    """3x3 patches, stride 2, padding 1.  (N,H,W,C) -> (N*Ho*Wo, 9*C)."""
    N, H, W, C = x_nhwc.shape
    Ho = (H + 2 - 3) // 2 + 1
    Wo = (W + 2 - 3) // 2 + 1
    xp = jnp.pad(x_nhwc, ((0, 0), (1, 1), (1, 1), (0, 0)))
    patches = []
    for kh in range(3):
        for kw in range(3):
            patches.append(xp[:, kh:kh + 2 * Ho:2, kw:kw + 2 * Wo:2, :])
    X = jnp.concatenate(patches, axis=-1)                 # (N, Ho, Wo, 9*C)
    return X.reshape(N * Ho * Wo, 9 * C), (N, Ho, Wo)


def down4_forward_nhwc(xr, xi, wr, wi, br, bi, *,
                       compute_dtype=jnp.bfloat16, tm_max=2048):
    """NHWC-in / NHWC-out fast path (avoids NCHW transposes when layers chain)."""
    N, H, W, Cin = xr.shape
    Cout = wr.shape[0]
    K = 9 * Cin

    # TODO(synk): fold the stride-2 im2col into the kernel (halo tiles / manual
    # DMA) to remove the ~2.25x expanded patch matrix from HBM traffic.
    Xr, (Nb, Ho, Wo) = _im2col_s2_k3_p1(xr)
    Xi, _ = _im2col_s2_k3_p1(xi)
    M = Xr.shape[0]

    Kp = _round_up(2 * K, 128)      # lane-aligned contraction dim
    Cp = _round_up(2 * Cout, 128)   # lane-dense packed output dim

    # X = [Xr | Xi | 0-pad], cast to compute dtype (bf16 by default: mem-bound).
    X = jnp.concatenate([Xr, Xi], axis=1)
    X = jnp.pad(X, ((0, 0), (0, Kp - 2 * K))).astype(compute_dtype)

    # (Cout, Cin, 3, 3) -> (kh, kw, Cin, Cout) -> (9*Cin, Cout): matches patch order.
    Wr = jnp.transpose(wr, (2, 3, 1, 0)).reshape(K, Cout).astype(jnp.float32)
    Wi = jnp.transpose(wi, (2, 3, 1, 0)).reshape(K, Cout).astype(jnp.float32)
    # [Xr | Xi] @ [[Wr, Wi], [-Wi, Wr]] = [Xr Wr - Xi Wi | Xr Wi + Xi Wr]
    Wp = jnp.concatenate(
        [jnp.concatenate([Wr, Wi], axis=1),
         jnp.concatenate([-Wi, Wr], axis=1)], axis=0)
    Wp = jnp.pad(Wp, ((0, Kp - 2 * K), (0, Cp - 2 * Cout))).astype(compute_dtype)

    # conv_r / conv_i each carry their own bias:  real += (br - bi), imag += (br + bi)
    Bp = jnp.concatenate([
        (br - bi).astype(jnp.float32),
        (br + bi).astype(jnp.float32),
        jnp.zeros((Cp - 2 * Cout,), jnp.float32),
    ]).reshape(1, Cp)

    tm = min(tm_max, _round_up(M, 8))
    grid = (pl.cdiv(M, tm),)

    out = pl.pallas_call(
        _down4_kernel,
        out_shape=jax.ShapeDtypeStruct((M, Cp), jnp.float32),
        grid=grid,
        in_specs=[
            pl.BlockSpec((tm, Kp), lambda i: (i, 0)),   # X tiles (pipelined)
            pl.BlockSpec((Kp, Cp), lambda i: (0, 0)),   # packed weights (resident)
            pl.BlockSpec((1, Cp), lambda i: (0, 0)),    # packed bias (resident)
        ],
        out_specs=pl.BlockSpec((tm, Cp), lambda i: (i, 0)),
        compiler_params=pltpu.CompilerParams(
            dimension_semantics=("parallel",),          # megacore on v7x
            vmem_limit_bytes=48 * 1024 * 1024,
        ),
    )(X, Wp, Bp)

    out = out.reshape(Nb, Ho, Wo, Cp)
    return out[..., :Cout], out[..., Cout:2 * Cout]


def down4_forward(xr_nchw, xi_nchw, wr, wi, br, bi, **kwargs):
    """PyTorch-layout wrapper: NCHW real/imag in, NCHW real/imag out."""
    xr = jnp.transpose(xr_nchw, (0, 2, 3, 1))
    xi = jnp.transpose(xi_nchw, (0, 2, 3, 1))
    out_r, out_i = down4_forward_nhwc(xr, xi, wr, wi, br, bi, **kwargs)
    return (jnp.transpose(out_r, (0, 3, 1, 2)),
            jnp.transpose(out_i, (0, 3, 1, 2)))


def _reference(xr, xi, wr, wi, br, bi):
    """Plain-JAX reference of the same complex conv + complex relu (NCHW, f32)."""
    dn = jax.lax.conv_dimension_numbers(xr.shape, wr.shape, ("NCHW", "OIHW", "NCHW"))
    conv = lambda x, w: jax.lax.conv_general_dilated(
        x, w, window_strides=(2, 2), padding=((1, 1), (1, 1)),
        dimension_numbers=dn, precision=jax.lax.Precision.HIGHEST)
    fr_r = conv(xr, wr) + br[None, :, None, None]
    fr_i = conv(xi, wr) + br[None, :, None, None]
    fi_r = conv(xr, wi) + bi[None, :, None, None]
    fi_i = conv(xi, wi) + bi[None, :, None, None]
    out_r = fr_r - fi_i
    out_i = fr_i + fi_r
    return jnp.maximum(out_r, 0.0), jnp.maximum(out_i, 0.0)


if __name__ == "__main__":
    key = jax.random.PRNGKey(0)
    N, Cin, Cout, H, W = 2, 4, 8, 16, 16

    k1, k2, k3, k4, k5, k6 = jax.random.split(key, 6)
    # Complex input, represented as separate real / imag float32 tensors (NCHW).
    xr = jax.random.normal(k1, (N, Cin, H, W), jnp.float32)
    xi = jax.random.normal(k2, (N, Cin, H, W), jnp.float32)

    # Deterministic synthetic parameters (shapes match nn.Conv2d(Cin, Cout, 3)).
    fan_in = Cin * 3 * 3
    scale = 1.0 / jnp.sqrt(jnp.float32(fan_in))
    wr = jax.random.uniform(k3, (Cout, Cin, 3, 3), jnp.float32, -scale, scale)
    wi = jax.random.uniform(k4, (Cout, Cin, 3, 3), jnp.float32, -scale, scale)
    br = jax.random.uniform(k5, (Cout,), jnp.float32, -scale, scale)
    bi = jax.random.uniform(k6, (Cout,), jnp.float32, -scale, scale)

    ref_r, ref_i = _reference(xr, xi, wr, wi, br, bi)

    # --- exactness check: f32 operands through the same Pallas kernel ---------
    out_r, out_i = down4_forward(xr, xi, wr, wi, br, bi,
                                 compute_dtype=jnp.float32)
    jax.block_until_ready((out_r, out_i))
    assert out_r.shape == (N, Cout, H // 2, W // 2)
    assert out_i.shape == (N, Cout, H // 2, W // 2)
    # Tolerance covers backend f32 matmul precision modes (bf16x3 vs HIGHEST)
    # while still catching any structural error (bias/sign/patch-order ~1e-1).
    assert jnp.allclose(out_r, ref_r, atol=1e-2, rtol=1e-2)
    assert jnp.allclose(out_i, ref_i, atol=1e-2, rtol=1e-2)

    # --- default fast path: bf16 matmul operands, f32 accumulate + epilogue ---
    fast_r, fast_i = down4_forward(xr, xi, wr, wi, br, bi)
    jax.block_until_ready((fast_r, fast_i))
    assert fast_r.shape == (N, Cout, H // 2, W // 2)
    assert jnp.allclose(fast_r, ref_r, atol=5e-2, rtol=5e-2)
    assert jnp.allclose(fast_i, ref_i, atol=5e-2, rtol=5e-2)

    print("KERNEL_OK")
</pallas_src>

<mosaic_0001>
module attributes {stable_mosaic.version = 11 : i64} {
  func.func @_down4_kernel(%arg0: i32, %arg1: memref<128x128xf32, #tpu.memory_space<vmem>>, %arg2: memref<128x128xf32, #tpu.memory_space<vmem>>, %arg3: memref<1x128xf32, #tpu.memory_space<vmem>>, %arg4: memref<128x128xf32, #tpu.memory_space<vmem>>) attributes {dimension_semantics = [#tpu.dimension_semantics<parallel>], iteration_bounds = array<i64: 1>, scalar_prefetch = 0 : i64, scratch_operands = 0 : i64, tpu.core_type = #tpu.core_type<tc>, window_params = [{transform_indices = @transform_0, window_bounds = array<i64: 128, 128>}, {pipeline_mode = #tpu.pipeline_mode<synchronous>, transform_indices = @transform_1, window_bounds = array<i64: 128, 128>}, {pipeline_mode = #tpu.pipeline_mode<synchronous>, transform_indices = @transform_2, window_bounds = array<i64: 1, 128>}, {transform_indices = @transform_3, window_bounds = array<i64: 128, 128>}]} {
    %c0 = arith.constant 0 : index
    %c0_0 = arith.constant 0 : index
    %0 = vector.load %arg1[%c0, %c0_0] : memref<128x128xf32, #tpu.memory_space<vmem>>, vector<128x128xf32>
    %c0_1 = arith.constant 0 : index
    %c0_2 = arith.constant 0 : index
    %1 = vector.load %arg2[%c0_1, %c0_2] : memref<128x128xf32, #tpu.memory_space<vmem>>, vector<128x128xf32>
    %cst = arith.constant dense<0.000000e+00> : vector<128x128xf32>
    %2 = tpu.matmul %0, %1, %cst {dimension_numbers = #tpu.dot_dimension_numbers<[1], [0], [0], [1], [0, 0, 1, 1], [], []>} : vector<128x128xf32>, vector<128x128xf32>, vector<128x128xf32> -> vector<128x128xf32>
    %c0_3 = arith.constant 0 : index
    %c0_4 = arith.constant 0 : index
    %3 = vector.load %arg3[%c0_3, %c0_4] : memref<1x128xf32, #tpu.memory_space<vmem>>, vector<1x128xf32>
    %4 = vector.broadcast %3 : vector<1x128xf32> to vector<128x128xf32>
    %5 = arith.addf %2, %4 : vector<128x128xf32>
    %cst_5 = arith.constant 0.000000e+00 : f32
    %6 = vector.broadcast %cst_5 : f32 to vector<128x128xf32>
    %7 = arith.maximumf %5, %6 : vector<128x128xf32>
    %c0_6 = arith.constant 0 : index
    %c0_7 = arith.constant 0 : index
    %8 = vector.load %arg4[%c0_6, %c0_7] : memref<128x128xf32, #tpu.memory_space<vmem>>, vector<128x128xf32>
    tpu.vector_store %arg4[%c0_6, %c0_7], %7 {strides = array<i32>} : memref<128x128xf32, #tpu.memory_space<vmem>>, vector<128x128xf32>,
    return
  }
  func.func @transform_0(%arg0: i32) -> (i32, i32) {
    %c0_i32 = arith.constant 0 : i32
    %c0_i32_0 = arith.constant 0 : i32
    return %arg0, %c0_i32 : i32, i32
  }
  func.func @transform_1(%arg0: i32) -> (i32, i32) {
    %c0_i32 = arith.constant 0 : i32
    %c0_i32_0 = arith.constant 0 : i32
    %c0_i32_1 = arith.constant 0 : i32
    return %c0_i32, %c0_i32_0 : i32, i32
  }
  func.func @transform_2(%arg0: i32) -> (i32, i32) {
    %c0_i32 = arith.constant 0 : i32
    %c0_i32_0 = arith.constant 0 : i32
    %c0_i32_1 = arith.constant 0 : i32
    return %c0_i32, %c0_i32_0 : i32, i32
  }
  func.func @transform_3(%arg0: i32) -> (i32, i32) {
    %c0_i32 = arith.constant 0 : i32
    %c0_i32_0 = arith.constant 0 : i32
    return %arg0, %c0_i32 : i32, i32
  }
}

</mosaic_0001>

<llo_original>
// kernel: tpu_custom_call.1
$region0: #{tpu_custom_call.1}
  #allocation0 [shape = 'u32[]', space=smem, size = 0x4, offset = 0x4, fixed_abs, tag = 'smem constant byte address 0x4 - core index']
  #allocation1 [shape = 'u32[144,128]{1,0:T(1,128)}', space=vmem, size = 0x12000, scoped, tag = 'internal scratch']
  %s0 = inlined_call_operand.hbm [shape: f32[128,128], index: 0, kind: input, shape index: {}]
  %s1 = inlined_call_operand.hbm [shape: f32[128,128], index: 1, kind: input, shape index: {}]
  %s2 = inlined_call_operand.vmem [shape: f32[1,128], index: 2, kind: input, shape index: {}]
  %s3 = inlined_call_operand.hbm [shape: f32[128,128], index: 3, kind: output, shape index: {}]
  %s4 = sld [smem:[#allocation0]]
  $region30: #{tpu_custom_call.1} parent=0
    _
  %s6 = ssub.s32 1, %s4
  %s7 = scalar_select 0, %s6, %s4
  $region1: #{tpu_custom_call.1} parent=0
    #allocation2 [shape = 'u8[65536]{0}', space=vmem, size = 0x10000, scoped, tag = 'input window, operand 0, single buffered']
    #allocation3 [shape = 's32[1]{0}', space=sflag, size = 0x4, scoped, tag = 'scoped memory for tpu_custom_call.1']
    #allocation4 [shape = 's32[1]{0}', space=sflag, size = 0x4, scoped, tag = 'scoped memory for tpu_custom_call.1']
    #allocation5 [shape = 'u8[65536]{0}', space=vmem, size = 0x10000, scoped, tag = 'input window, operand 1, single buffered']
    #allocation6 [shape = 's32[1]{0}', space=sflag, size = 0x4, scoped, tag = 'scoped memory for tpu_custom_call.1']
    #allocation7 [shape = 'u8[65536]{0}', space=vmem, size = 0x10000, scoped, tag = 'output window, operand 0, single buffered']
    %8 = vsyncpa [#allocation3], 0
    %9 = vsyncpa [#allocation6], 0
    %10 = vsyncpa [#allocation4], 0
    // Predicated region
    $region2: #{tpu_custom_call.1} parent=1 // pred_check
      _
    $region3: #{tpu_custom_call.1} parent=1 // pred_check_branch
      %12 = sbr.rel (0) target = $region5
    $region4: #{tpu_custom_call.1} parent=1 // pred_region
      %s14 = ssub.s32 2048, 2048
      %15 = vsyncadd [#allocation3], %s14
      %s16 = sshll.u32 [#allocation2], 4
      %s17 = int_to_ptr.vmem [resolvable:$true] %s16
      %22 = dma.hbm_to_vmem [thread:$0]  %s0, 2048, %s17, [#allocation3], 128, 128, 8
    $region5: #{tpu_custom_call.1} parent=1 // pred_fallthru
      _
    // Predicated region
    $region6: #{tpu_custom_call.1} parent=1 // pred_check
      _
    $region7: #{tpu_custom_call.1} parent=1 // pred_check_branch
      %24 = sbr.rel (0) target = $region9
    $region8: #{tpu_custom_call.1} parent=1 // pred_region
      %s26 = ssub.s32 2048, 2048
      %27 = vsyncadd [#allocation6], %s26
      %s28 = sshll.u32 [#allocation5], 4
      %s29 = int_to_ptr.vmem [resolvable:$true] %s28
      %34 = dma.hbm_to_vmem [thread:$0]  %s1, 2048, %s29, [#allocation6], 128, 128, 8
    $region9: #{tpu_custom_call.1} parent=1 // pred_fallthru
      _
    // Predicated region
    $region10: #{tpu_custom_call.1} parent=1 // pred_check
      _
    $region11: #{tpu_custom_call.1} parent=1 // pred_check_branch
      %36 = sbr.rel (0) target = $region13
    $region12: #{tpu_custom_call.1} parent=1 // pred_region
      _
    $region13: #{tpu_custom_call.1} parent=1 // pred_fallthru
      _
    // Predicated region
    $region14: #{tpu_custom_call.1} parent=1 // pred_check
      _
    $region15: #{tpu_custom_call.1} parent=1 // pred_check_branch
      %38 = sbr.rel (0) target = $region17
    $region16: #{tpu_custom_call.1} parent=1 // pred_region
      %39 = dma.done [#allocation3], 2048
    $region17: #{tpu_custom_call.1} parent=1 // pred_fallthru
      _
    // Predicated region
    $region18: #{tpu_custom_call.1} parent=1 // pred_check
      _
    $region19: #{tpu_custom_call.1} parent=1 // pred_check_branch
      %41 = sbr.rel (0) target = $region21
    $region20: #{tpu_custom_call.1} parent=1 // pred_region
      %42 = dma.done [#allocation6], 2048
    $region21: #{tpu_custom_call.1} parent=1 // pred_fallthru
      _
    %v43 = vld [vmem:[#allocation2] sm:$0xff]
    %v44 = vld [vmem:[#allocation2 + $0x8] sm:$0xff]
    %v45 = vld [vmem:[#allocation2 + $0x10] sm:$0xff]
    %v46 = vld [vmem:[#allocation2 + $0x18] sm:$0xff]
    %v47 = vld [vmem:[#allocation2 + $0x20] sm:$0xff]
    %v48 = vld [vmem:[#allocation2 + $0x28] sm:$0xff]
    %v49 = vld [vmem:[#allocation2 + $0x30] sm:$0xff]
    %v50 = vld [vmem:[#allocation2 + $0x38] sm:$0xff]
    %v51 = vld [vmem:[#allocation2 + $0x40] sm:$0xff]
    %v52 = vld [vmem:[#allocation2 + $0x48] sm:$0xff]
    %v53 = vld [vmem:[#allocation2 + $0x50] sm:$0xff]
    %v54 = vld [vmem:[#allocation2 + $0x58] sm:$0xff]
    %v55 = vld [vmem:[#allocation2 + $0x60] sm:$0xff]
    %v56 = vld [vmem:[#allocation2 + $0x68] sm:$0xff]
    %v57 = vld [vmem:[#allocation2 + $0x70] sm:$0xff]
    %v58 = vld [vmem:[#allocation2 + $0x78] sm:$0xff]
    %v59 = vld [vmem:[#allocation5] sm:$0xff]
    %v60 = vld [vmem:[#allocation5 + $0x8] sm:$0xff]
    %v61 = vld [vmem:[#allocation5 + $0x10] sm:$0xff]
    %v62 = vld [vmem:[#allocation5 + $0x18] sm:$0xff]
    %v63 = vld [vmem:[#allocation5 + $0x20] sm:$0xff]
    %v64 = vld [vmem:[#allocation5 + $0x28] sm:$0xff]
    %v65 = vld [vmem:[#allocation5 + $0x30] sm:$0xff]
    %v66 = vld [vmem:[#allocation5 + $0x38] sm:$0xff]
    %v67 = vld [vmem:[#allocation5 + $0x40] sm:$0xff]
    %v68 = vld [vmem:[#allocation5 + $0x48] sm:$0xff]
    %v69 = vld [vmem:[#allocation5 + $0x50] sm:$0xff]
    %v70 = vld [vmem:[#allocation5 + $0x58] sm:$0xff]
    %v71 = vld [vmem:[#allocation5 + $0x60] sm:$0xff]
    %v72 = vld [vmem:[#allocation5 + $0x68] sm:$0xff]
    %v73 = vld [vmem:[#allocation5 + $0x70] sm:$0xff]
    %v74 = vld [vmem:[#allocation5 + $0x78] sm:$0xff]
    %v75 = vld [vmem:[%s2] sm:$0x1]
    %v77 = vlaneseq
    %v78 = vshrl.u32 %v77, 7
    %v79 = vsub.s32 0, %v78
    %v80 = vrot.slane %v75, %v79
    %82 = vmatprep.subr.mxu0 0.0
    %83 = vmatpush1.msra.mxu0 %v74
    %84 = vmatprep.subr.mxu0 0.0
    %85 = vmatpush1.msra.mxu0 %v73
    %86 = vmatprep.subr.mxu0 0.0
    %87 = vmatpush1.msra.mxu0 %v72
    %88 = vmatprep.subr.mxu0 0.0
    %89 = vmatpush1.msra.mxu0 %v71
    %90 = vmatprep.subr.mxu0 0.0
    %91 = vmatpush1.msra.mxu0 %v70
    %92 = vmatprep.subr.mxu0 0.0
    %93 = vmatpush1.msra.mxu0 %v69
    %94 = vmatprep.subr.mxu0 0.0
    %95 = vmatpush1.msra.mxu0 %v68
    %96 = vmatprep.subr.mxu0 0.0
    %97 = vmatpush1.msra.mxu0 %v67
    %98 = vmatprep.subr.mxu0 0.0
    %99 = vmatpush1.msra.mxu0 %v66
    %100 = vmatprep.subr.mxu0 0.0
    %101 = vmatpush1.msra.mxu0 %v65
    %102 = vmatprep.subr.mxu0 0.0
    %103 = vmatpush1.msra.mxu0 %v64
    %104 = vmatprep.subr.mxu0 0.0
    %105 = vmatpush1.msra.mxu0 %v63
    %106 = vmatprep.subr.mxu0 0.0
    %107 = vmatpush1.msra.mxu0 %v62
    %108 = vmatprep.subr.mxu0 0.0
    %109 = vmatpush1.msra.mxu0 %v61
    %110 = vmatprep.subr.mxu0 0.0
    %111 = vmatpush1.msra.mxu0 %v60
    %112 = vmatprep.subr.mxu0 0.0
    %113 = vmatpush1.msra.mxu0 %v59
    %114 = vmatprep.subr.mxu0 0.0
    %115 = vmatpush2.msra.mxu0 0.0
    %116 = vmatprep.subr.mxu0 0.0
    %117 = vmatpush2.msra.mxu0 0.0
    %118 = vmatprep.subr.mxu0 0.0
    %119 = vmatpush2.msra.mxu0 0.0
    %120 = vmatprep.subr.mxu0 0.0
    %121 = vmatpush2.msra.mxu0 0.0
    %122 = vmatprep.subr.mxu0 0.0
    %123 = vmatpush2.msra.mxu0 0.0
    %124 = vmatprep.subr.mxu0 0.0
    %125 = vmatpush2.msra.mxu0 0.0
    %126 = vmatprep.subr.mxu0 0.0
    %127 = vmatpush2.msra.mxu0 0.0
    %128 = vmatprep.subr.mxu0 0.0
    %129 = vmatpush2.msra.mxu0 0.0
    %130 = vmatprep.subr.mxu0 0.0
    %131 = vmatpush2.msra.mxu0 0.0
    %132 = vmatprep.subr.mxu0 0.0
    %133 = vmatpush2.msra.mxu0 0.0
    %134 = vmatprep.subr.mxu0 0.0
    %135 = vmatpush2.msra.mxu0 0.0
    %136 = vmatprep.subr.mxu0 0.0
    %137 = vmatpush2.msra.mxu0 0.0
    %138 = vmatprep.subr.mxu0 0.0
    %139 = vmatpush2.msra.mxu0 0.0
    %140 = vmatprep.subr.mxu0 0.0
    %141 = vmatpush2.msra.mxu0 0.0
    %142 = vmatprep.subr.mxu0 0.0
    %143 = vmatpush2.msra.mxu0 0.0
    %144 = vmatprep.subr.mxu0 0.0
    %145 = vmatpush2.msra.mxu0 0.0
    %146 = vmatprep.mubr.f32.mxu0 0.0
    %147 = vmatmul.mubr.f32.gmra.mxu0 %v43
    %v148 = vpop.f32.mrf.mxu0
    %v149 = vadd.f32 %v80, %v148
    %v150 = vpop.f32.mrf.mxu0
    %151 = vmatprep.mubr.f32.mxu0 0.0
    %152 = vmatmul.mubr.f32.gmra.mxu0 %v44
    %v153 = vpop.f32.mrf.mxu0
    %v154 = vadd.f32 %v80, %v153
    %v155 = vpop.f32.mrf.mxu0
    %156 = vmatprep.mubr.f32.mxu0 0.0
    %157 = vmatmul.mubr.f32.gmra.mxu0 %v45
    %v158 = vpop.f32.mrf.mxu0
    %v159 = vadd.f32 %v80, %v158
    %v160 = vpop.f32.mrf.mxu0
    %161 = vmatprep.mubr.f32.mxu0 0.0
    %162 = vmatmul.mubr.f32.gmra.mxu0 %v46
    %v163 = vpop.f32.mrf.mxu0
    %v164 = vadd.f32 %v80, %v163
    %v165 = vpop.f32.mrf.mxu0
    %166 = vmatprep.mubr.f32.mxu0 0.0
    %167 = vmatmul.mubr.f32.gmra.mxu0 %v47
    %v168 = vpop.f32.mrf.mxu0
    %v169 = vadd.f32 %v80, %v168
    %v170 = vpop.f32.mrf.mxu0
    %171 = vmatprep.mubr.f32.mxu0 0.0
    %172 = vmatmul.mubr.f32.gmra.mxu0 %v48
    %v173 = vpop.f32.mrf.mxu0
    %v174 = vadd.f32 %v80, %v173
    %v175 = vpop.f32.mrf.mxu0
    %176 = vmatprep.mubr.f32.mxu0 0.0
    %177 = vmatmul.mubr.f32.gmra.mxu0 %v49
    %v178 = vpop.f32.mrf.mxu0
    %v179 = vadd.f32 %v80, %v178
    %v180 = vpop.f32.mrf.mxu0
    %181 = vmatprep.mubr.f32.mxu0 0.0
    %182 = vmatmul.mubr.f32.gmra.mxu0 %v50
    %v183 = vpop.f32.mrf.mxu0
    %v184 = vadd.f32 %v80, %v183
    %v185 = vpop.f32.mrf.mxu0
    %186 = vmatprep.mubr.f32.mxu0 0.0
    %187 = vmatmul.mubr.f32.gmra.mxu0 %v51
    %v188 = vpop.f32.mrf.mxu0
    %v189 = vadd.f32 %v80, %v188
    %v190 = vpop.f32.mrf.mxu0
    %191 = vmatprep.mubr.f32.mxu0 0.0
    %192 = vmatmul.mubr.f32.gmra.mxu0 %v52
    %v193 = vpop.f32.mrf.mxu0
    %v194 = vadd.f32 %v80, %v193
    %v195 = vpop.f32.mrf.mxu0
    %196 = vmatprep.mubr.f32.mxu0 0.0
    %197 = vmatmul.mubr.f32.gmra.mxu0 %v53
    %v198 = vpop.f32.mrf.mxu0
    %v199 = vadd.f32 %v80, %v198
    %v200 = vpop.f32.mrf.mxu0
    %201 = vmatprep.mubr.f32.mxu0 0.0
    %202 = vmatmul.mubr.f32.gmra.mxu0 %v54
    %v203 = vpop.f32.mrf.mxu0
    %v204 = vadd.f32 %v80, %v203
    %v205 = vpop.f32.mrf.mxu0
    %206 = vmatprep.mubr.f32.mxu0 0.0
    %207 = vmatmul.mubr.f32.gmra.mxu0 %v55
    %v208 = vpop.f32.mrf.mxu0
    %v209 = vadd.f32 %v80, %v208
    %v210 = vpop.f32.mrf.mxu0
    %211 = vmatprep.mubr.f32.mxu0 0.0
    %212 = vmatmul.mubr.f32.gmra.mxu0 %v56
    %v213 = vpop.f32.mrf.mxu0
    %v214 = vadd.f32 %v80, %v213
    %v215 = vpop.f32.mrf.mxu0
    %216 = vmatprep.mubr.f32.mxu0 0.0
    %217 = vmatmul.mubr.f32.gmra.mxu0 %v57
    %v218 = vpop.f32.mrf.mxu0
    %v219 = vadd.f32 %v80, %v218
    %v220 = vpop.f32.mrf.mxu0
    %221 = vmatprep.mubr.f32.mxu0 0.0
    %222 = vmatmul.mubr.f32.gmra.mxu0 %v58
    %v223 = vpop.f32.mrf.mxu0
    %v224 = vadd.f32 %v80, %v223
    %v225 = vpop.f32.mrf.mxu0
    %226 = vdwg.mxu0
    %v227 = vmax.f32 %v149, 0.0
    %v228 = vmax.f32 %v154, 0.0
    %v229 = vmax.f32 %v159, 0.0
    %v230 = vmax.f32 %v164, 0.0
    %v231 = vmax.f32 %v169, 0.0
    %v232 = vmax.f32 %v174, 0.0
    %v233 = vmax.f32 %v179, 0.0
    %v234 = vmax.f32 %v184, 0.0
    %v235 = vmax.f32 %v189, 0.0
    %v236 = vmax.f32 %v194, 0.0
    %v237 = vmax.f32 %v199, 0.0
    %v238 = vmax.f32 %v204, 0.0
    %v239 = vmax.f32 %v209, 0.0
    %v240 = vmax.f32 %v214, 0.0
    %v241 = vmax.f32 %v219, 0.0
    %v242 = vmax.f32 %v224, 0.0
    %243 = vst [vmem:[#allocation7] sm:$0xff] %v227
    %244 = vst [vmem:[#allocation7 + $0x8] sm:$0xff] %v228
    %245 = vst [vmem:[#allocation7 + $0x10] sm:$0xff] %v229
    %246 = vst [vmem:[#allocation7 + $0x18] sm:$0xff] %v230
    %247 = vst [vmem:[#allocation7 + $0x20] sm:$0xff] %v231
    %248 = vst [vmem:[#allocation7 + $0x28] sm:$0xff] %v232
    %249 = vst [vmem:[#allocation7 + $0x30] sm:$0xff] %v233
    %250 = vst [vmem:[#allocation7 + $0x38] sm:$0xff] %v234
    %251 = vst [vmem:[#allocation7 + $0x40] sm:$0xff] %v235
    %252 = vst [vmem:[#allocation7 + $0x48] sm:$0xff] %v236
    %253 = vst [vmem:[#allocation7 + $0x50] sm:$0xff] %v237
    %254 = vst [vmem:[#allocation7 + $0x58] sm:$0xff] %v238
    %255 = vst [vmem:[#allocation7 + $0x60] sm:$0xff] %v239
    %256 = vst [vmem:[#allocation7 + $0x68] sm:$0xff] %v240
    %257 = vst [vmem:[#allocation7 + $0x70] sm:$0xff] %v241
    %258 = vst [vmem:[#allocation7 + $0x78] sm:$0xff] %v242
    // Predicated region
    $region22: #{tpu_custom_call.1} parent=1 // pred_check
      _
    $region23: #{tpu_custom_call.1} parent=1 // pred_check_branch
      %260 = sbr.rel (0) target = $region25
    $region24: #{tpu_custom_call.1} parent=1 // pred_region
      %s262 = ssub.s32 2048, 2048
      %263 = vsyncadd [#allocation4], %s262
      %s264 = sshll.u32 [#allocation7], 4
      %s265 = int_to_ptr.vmem [resolvable:$true] %s264
      %270 = dma.vmem_to_hbm [thread:$0]  %s265, 2048, %s3, [#allocation4], 128, 128, 8
    $region25: #{tpu_custom_call.1} parent=1 // pred_fallthru
      _
    // Predicated region
    $region26: #{tpu_custom_call.1} parent=1 // pred_check
      _
    $region27: #{tpu_custom_call.1} parent=1 // pred_check_branch
      %272 = sbr.rel (0) target = $region29
    $region28: #{tpu_custom_call.1} parent=1 // pred_region
      %273 = dma.done [#allocation4], 2048
    $region29: #{tpu_custom_call.1} parent=1 // pred_fallthru
      _
    %274 = vsyncpa [#allocation3], 1
    %275 = vsyncpa [#allocation6], 1
    %276 = vsyncpa [#allocation4], 1

</llo_original>
